<compile_context>
chip_gen: v7x
topology: tpu7x:2x2x1
jax: 0.10.0
libtpu: 0.0.40
codegen_flags: <defaults>
</compile_context>

<pallas_src>
import jax
import jax.numpy as jnp
from jax.experimental import pallas as pl
from jax.experimental.pallas import tpu as pltpu


def st_gcn_forward(x, A, params):
    N, c_in, T, V = x.shape
    K = A.shape[0]
    kt, c_out, _ = params["wt"].shape
    TV = T * V
    pad = (kt - 1) // 2

    s1, b1 = params["s1"], params["b1"]
    s2, b2 = params["s2"], params["b2"]

    # ---- wrapper-side folding (zero in-kernel cost) ---------------------------------------
    # BN1 scale folded into the gcn 1x1 weight; residual 1x1 conv stacked into the same matmul.
    wg_f = params["wg"] * jnp.tile(s1, K)[:, None]                    # (K*c_out, c_in)
    w_big = jnp.concatenate([wg_f, params["wr_eff"]], axis=0)         # (K*c_out + c_out, c_in)

    # gcn conv bias passed through the graph aggregation + BN1 bias -> per-(c, v) bias, tiled over T.
    bg_kc = params["bg"].reshape(K, c_out)
    colsum = A.sum(axis=1)                                            # (K, V): sum_v A[k, v, w]
    bias_g = jnp.einsum("kc,kw->cw", bg_kc, colsum)                   # (c_out, V)
    bias1 = jnp.tile(s1[:, None] * bias_g + b1[:, None], (1, T))      # (c_out, T*V)

    # BN2 folded into the temporal-conv weight; all remaining biases combined into one column.
    wt_f = params["wt"] * s2[None, :, None]                           # (kt, c_out, c_out)
    b_fin = (s2 * params["bt"] + b2 + params["br_eff"])[:, None]      # (c_out, 1)

    # Block-diagonal adjacency kron(I_T, A[k]): aggregation becomes a lane-dense MXU matmul.
    eye_t = jnp.eye(T, dtype=A.dtype)
    abig = jnp.einsum("ts,kvw->ktvsw", eye_t, A).reshape(K, TV, TV)   # (K, TV, TV)

    # Lane-dense activation layout: (N, C, T*V) with last dim = 128.
    x_flat = x.reshape(N, c_in, TV)

    def kernel(x_ref, abig_ref, wbig_ref, bias1_ref, wt_ref, bfin_ref, o_ref):
        xf = x_ref[...]                                               # (c_in, TV)

        # fused gcn-1x1 + residual-1x1 channel matmul (single MXU push)
        y = jnp.dot(wbig_ref[...], xf, preferred_element_type=jnp.float32)   # (K*c_out + c_out, TV)

        # graph aggregation with block-diagonal A on the lane axis + folded BN1 bias
        z = bias1_ref[...]
        for kk in range(K):
            z = z + jnp.dot(y[kk * c_out:(kk + 1) * c_out, :], abig_ref[kk],
                            preferred_element_type=jnp.float32)
        z = jnp.maximum(z, 0.0)                                       # BN1(folded) + ReLU

        # residual slice + all folded biases (temporal-conv bias, BN2, residual BN)
        out = y[K * c_out:, :] + bfin_ref[...]

        # (kt x 1) temporal conv, 'same' padding, via XLU lane rolls + lane masks (no scratch)
        if kt > 1:
            lane = jax.lax.broadcasted_iota(jnp.int32, (c_out, TV), 1)
        for dt in range(kt):
            off = dt - pad
            if off == 0:
                zs = z
            else:
                zs = pltpu.roll(z, shift=(-off * V) % TV, axis=1)
                lo = max(0, -off * V)
                hi = TV - max(0, off * V)
                zs = jnp.where((lane >= lo) & (lane < hi), zs, 0.0)
            out = out + jnp.dot(wt_ref[dt], zs, preferred_element_type=jnp.float32)

        o_ref[...] = jnp.maximum(out, 0.0).astype(o_ref.dtype)

    consts = (abig, w_big, bias1, wt_f, b_fin)

    def const_spec(arr):
        nd = arr.ndim
        return pl.BlockSpec(arr.shape, lambda n, _nd=nd: (0,) * _nd)

    out_flat = pl.pallas_call(
        kernel,
        out_shape=jax.ShapeDtypeStruct((N, c_out, TV), x.dtype),
        grid_spec=pltpu.PrefetchScalarGridSpec(
            num_scalar_prefetch=0,
            grid=(N,),
            in_specs=[pl.BlockSpec((None, c_in, TV), lambda n: (n, 0, 0))]
                     + [const_spec(a) for a in consts],
            out_specs=pl.BlockSpec((None, c_out, TV), lambda n: (n, 0, 0)),
        ),
        compiler_params=pltpu.CompilerParams(dimension_semantics=("parallel",)),
    )(x_flat, *consts)

    return out_flat.reshape(N, c_out, T, V), A


def st_gcn_ref(x, A, params):
    """Pure-JAX reference with identical (eval-mode) semantics, using the unfolded params."""
    N, c_in, T, V = x.shape
    K = A.shape[0]
    kt, c_out, _ = params["wt"].shape
    pad = (kt - 1) // 2

    y = jnp.einsum("oc,nctv->notv", params["wg"], x) + params["bg"][None, :, None, None]
    y = y.reshape(N, K, c_out, T, V)
    z = jnp.einsum("nkctv,kvw->nctw", y, A)
    z = z * params["s1"][None, :, None, None] + params["b1"][None, :, None, None]
    z = jnp.maximum(z, 0.0)
    zp = jnp.pad(z, ((0, 0), (0, 0), (pad, pad), (0, 0)))
    out = jnp.zeros((N, c_out, T, V), jnp.float32)
    for dt in range(kt):
        out = out + jnp.einsum("oc,nctv->notv", params["wt"][dt], zp[:, :, dt:dt + T, :])
    out = out + params["bt"][None, :, None, None]
    out = out * params["s2"][None, :, None, None] + params["b2"][None, :, None, None]
    res = jnp.einsum("oc,nctv->notv", params["wr_eff"], x) + params["br_eff"][None, :, None, None]
    return jnp.maximum(out + res, 0.0), A


def make_params(key, c_in, c_out, K, kt, eps=1e-5):
    ks = jax.random.split(key, 18)
    u = lambda k, shape, s=0.3: (jax.random.uniform(k, shape, jnp.float32) - 0.5) * 2.0 * s

    def bn_fold(k0, k1, k2, k3):
        gamma = 1.0 + u(k0, (c_out,), 0.1)
        beta = u(k1, (c_out,), 0.1)
        mean = u(k2, (c_out,), 0.2)
        var = 0.5 + jax.random.uniform(k3, (c_out,), dtype=jnp.float32)
        scale = gamma / jnp.sqrt(var + eps)
        bias = beta - mean * scale
        return scale, bias

    wg = u(ks[0], (K * c_out, c_in))            # gcn 1x1 conv weight (K*Cout, Cin)
    bg = u(ks[1], (K * c_out,), 0.1)
    s1, b1 = bn_fold(ks[2], ks[3], ks[4], ks[5])

    wt = u(ks[6], (kt, c_out, c_out))           # temporal conv weight, [dt, co, ci]
    bt = u(ks[7], (c_out,), 0.1)
    s2, b2 = bn_fold(ks[8], ks[9], ks[10], ks[11])

    wr = u(ks[12], (c_out, c_in))               # residual 1x1 conv weight
    br = u(ks[13], (c_out,), 0.1)
    sr, brn = bn_fold(ks[14], ks[15], ks[16], ks[17])
    wr_eff = sr[:, None] * wr                   # fold conv bias + BN into the matmul
    br_eff = sr * br + brn

    return dict(wg=wg, bg=bg, s1=s1, b1=b1, wt=wt, bt=bt, s2=s2, b2=b2,
                wr_eff=wr_eff, br_eff=br_eff)


if __name__ == "__main__":
    # st_gcn(in_channels=4, out_channels=8, kernel_size=(3, 3), stride=1)
    N, C_IN, C_OUT, T, V, K, KT = 2, 4, 8, 8, 16, 3, 3

    key = jax.random.PRNGKey(0)
    kx, ka, kp = jax.random.split(key, 3)

    x = jax.random.normal(kx, (N, C_IN, T, V), dtype=jnp.float32)
    A = jax.random.uniform(ka, (K, V, V), dtype=jnp.float32) / V
    params = make_params(kp, C_IN, C_OUT, K, KT)

    out, A_out = st_gcn_forward(x, A, params)
    out = jax.block_until_ready(out)

    ref, _ = st_gcn_ref(x, A, params)
    assert out.shape == (N, C_OUT, T, V)
    assert jnp.allclose(out, ref, atol=1e-4, rtol=1e-4), float(jnp.max(jnp.abs(out - ref)))
    print("KERNEL_OK")
</pallas_src>

<mosaic_0001>
module attributes {stable_mosaic.version = 11 : i64} {
  func.func @kernel(%arg0: i32, %arg1: memref<1x4x128xf32, #tpu.memory_space<vmem>>, %arg2: memref<3x128x128xf32, #tpu.memory_space<vmem>>, %arg3: memref<32x4xf32, #tpu.memory_space<vmem>>, %arg4: memref<8x128xf32, #tpu.memory_space<vmem>>, %arg5: memref<3x8x8xf32, #tpu.memory_space<vmem>>, %arg6: memref<8x1xf32, #tpu.memory_space<vmem>>, %arg7: memref<1x8x128xf32, #tpu.memory_space<vmem>>) attributes {dimension_semantics = [#tpu.dimension_semantics<parallel>], iteration_bounds = array<i64: 2>, scalar_prefetch = 0 : i64, scratch_operands = 0 : i64, tpu.core_type = #tpu.core_type<tc>, window_params = [{transform_indices = @transform_0, window_bounds = array<i64: 1, 4, 128>}, {pipeline_mode = #tpu.pipeline_mode<synchronous>, transform_indices = @transform_1, window_bounds = array<i64: 3, 128, 128>}, {pipeline_mode = #tpu.pipeline_mode<synchronous>, transform_indices = @transform_2, window_bounds = array<i64: 32, 4>}, {pipeline_mode = #tpu.pipeline_mode<synchronous>, transform_indices = @transform_3, window_bounds = array<i64: 8, 128>}, {pipeline_mode = #tpu.pipeline_mode<synchronous>, transform_indices = @transform_4, window_bounds = array<i64: 3, 8, 8>}, {pipeline_mode = #tpu.pipeline_mode<synchronous>, transform_indices = @transform_5, window_bounds = array<i64: 8, 1>}, {transform_indices = @transform_6, window_bounds = array<i64: 1, 8, 128>}]} {
    %c0 = arith.constant 0 : index
    %c0_0 = arith.constant 0 : index
    %c0_1 = arith.constant 0 : index
    %0 = vector.load %arg1[%c0, %c0_0, %c0_1] : memref<1x4x128xf32, #tpu.memory_space<vmem>>, vector<1x4x128xf32>
    %1 = vector.shape_cast %0 : vector<1x4x128xf32> to vector<4x128xf32>
    %c0_2 = arith.constant 0 : index
    %c0_3 = arith.constant 0 : index
    %2 = vector.load %arg3[%c0_2, %c0_3] : memref<32x4xf32, #tpu.memory_space<vmem>>, vector<32x4xf32>
    %cst = arith.constant dense<0.000000e+00> : vector<32x128xf32>
    %3 = tpu.matmul %2, %1, %cst {dimension_numbers = #tpu.dot_dimension_numbers<[1], [0], [0], [1], [0, 0, 1, 1], [], []>} : vector<32x4xf32>, vector<4x128xf32>, vector<32x128xf32> -> vector<32x128xf32>
    %c0_4 = arith.constant 0 : index
    %c0_5 = arith.constant 0 : index
    %4 = vector.load %arg4[%c0_4, %c0_5] : memref<8x128xf32, #tpu.memory_space<vmem>>, vector<8x128xf32>
    %5 = vector.extract_strided_slice %3 {offsets = [0, 0], sizes = [8, 128], strides = [1, 1]} : vector<32x128xf32> to vector<8x128xf32>
    %c0_6 = arith.constant 0 : index
    %c0_7 = arith.constant 0 : index
    %c0_8 = arith.constant 0 : index
    %6 = vector.load %arg2[%c0_6, %c0_7, %c0_8] : memref<3x128x128xf32, #tpu.memory_space<vmem>>, vector<1x128x128xf32>
    %7 = vector.shape_cast %6 : vector<1x128x128xf32> to vector<128x128xf32>
    %cst_9 = arith.constant dense<0.000000e+00> : vector<8x128xf32>
    %8 = tpu.matmul %5, %7, %cst_9 {dimension_numbers = #tpu.dot_dimension_numbers<[1], [0], [0], [1], [0, 0, 1, 1], [], []>} : vector<8x128xf32>, vector<128x128xf32>, vector<8x128xf32> -> vector<8x128xf32>
    %9 = arith.addf %4, %8 : vector<8x128xf32>
    %10 = vector.extract_strided_slice %3 {offsets = [8, 0], sizes = [8, 128], strides = [1, 1]} : vector<32x128xf32> to vector<8x128xf32>
    %c1 = arith.constant 1 : index
    %c0_10 = arith.constant 0 : index
    %c0_11 = arith.constant 0 : index
    %11 = vector.load %arg2[%c1, %c0_10, %c0_11] : memref<3x128x128xf32, #tpu.memory_space<vmem>>, vector<1x128x128xf32>
    %12 = vector.shape_cast %11 : vector<1x128x128xf32> to vector<128x128xf32>
    %cst_12 = arith.constant dense<0.000000e+00> : vector<8x128xf32>
    %13 = tpu.matmul %10, %12, %cst_12 {dimension_numbers = #tpu.dot_dimension_numbers<[1], [0], [0], [1], [0, 0, 1, 1], [], []>} : vector<8x128xf32>, vector<128x128xf32>, vector<8x128xf32> -> vector<8x128xf32>
    %14 = arith.addf %9, %13 : vector<8x128xf32>
    %15 = vector.extract_strided_slice %3 {offsets = [16, 0], sizes = [8, 128], strides = [1, 1]} : vector<32x128xf32> to vector<8x128xf32>
    %c2 = arith.constant 2 : index
    %c0_13 = arith.constant 0 : index
    %c0_14 = arith.constant 0 : index
    %16 = vector.load %arg2[%c2, %c0_13, %c0_14] : memref<3x128x128xf32, #tpu.memory_space<vmem>>, vector<1x128x128xf32>
    %17 = vector.shape_cast %16 : vector<1x128x128xf32> to vector<128x128xf32>
    %cst_15 = arith.constant dense<0.000000e+00> : vector<8x128xf32>
    %18 = tpu.matmul %15, %17, %cst_15 {dimension_numbers = #tpu.dot_dimension_numbers<[1], [0], [0], [1], [0, 0, 1, 1], [], []>} : vector<8x128xf32>, vector<128x128xf32>, vector<8x128xf32> -> vector<8x128xf32>
    %19 = arith.addf %14, %18 : vector<8x128xf32>
    %cst_16 = arith.constant 0.000000e+00 : f32
    %20 = vector.broadcast %cst_16 : f32 to vector<8x128xf32>
    %21 = arith.maximumf %19, %20 : vector<8x128xf32>
    %22 = vector.extract_strided_slice %3 {offsets = [24, 0], sizes = [8, 128], strides = [1, 1]} : vector<32x128xf32> to vector<8x128xf32>
    %c0_17 = arith.constant 0 : index
    %c0_18 = arith.constant 0 : index
    %23 = vector.load %arg6[%c0_17, %c0_18] : memref<8x1xf32, #tpu.memory_space<vmem>>, vector<8x1xf32>
    %24 = vector.broadcast %23 : vector<8x1xf32> to vector<8x128xf32>
    %25 = arith.addf %22, %24 : vector<8x128xf32>
    %26 = tpu.iota {dimensions = array<i32: 1>} : vector<8x128xi32>
    %c16_i32 = arith.constant 16 : i32
    %27 = tpu.dynamic_rotate %21 by %c16_i32 dim 1 : vector<8x128xf32>, i32 -> vector<8x128xf32>
    %c16_i32_19 = arith.constant 16 : i32
    %28 = vector.broadcast %c16_i32_19 : i32 to vector<8x128xi32>
    %29 = arith.cmpi sge, %26, %28 : vector<8x128xi32>
    %c128_i32 = arith.constant 128 : i32
    %30 = vector.broadcast %c128_i32 : i32 to vector<8x128xi32>
    %31 = arith.cmpi slt, %26, %30 : vector<8x128xi32>
    %32 = arith.andi %29, %31 : vector<8x128xi1>
    %cst_20 = arith.constant 0.000000e+00 : f32
    %33 = vector.broadcast %cst_20 : f32 to vector<8x128xf32>
    %34 = arith.select %32, %27, %33 : vector<8x128xi1>, vector<8x128xf32>
    %c0_21 = arith.constant 0 : index
    %c0_22 = arith.constant 0 : index
    %c0_23 = arith.constant 0 : index
    %35 = vector.load %arg5[%c0_21, %c0_22, %c0_23] : memref<3x8x8xf32, #tpu.memory_space<vmem>>, vector<1x8x8xf32>
    %36 = vector.shape_cast %35 : vector<1x8x8xf32> to vector<8x8xf32>
    %cst_24 = arith.constant dense<0.000000e+00> : vector<8x128xf32>
    %37 = tpu.matmul %36, %34, %cst_24 {dimension_numbers = #tpu.dot_dimension_numbers<[1], [0], [0], [1], [0, 0, 1, 1], [], []>} : vector<8x8xf32>, vector<8x128xf32>, vector<8x128xf32> -> vector<8x128xf32>
    %38 = arith.addf %25, %37 : vector<8x128xf32>
    %c1_25 = arith.constant 1 : index
    %c0_26 = arith.constant 0 : index
    %c0_27 = arith.constant 0 : index
    %39 = vector.load %arg5[%c1_25, %c0_26, %c0_27] : memref<3x8x8xf32, #tpu.memory_space<vmem>>, vector<1x8x8xf32>
    %40 = vector.shape_cast %39 : vector<1x8x8xf32> to vector<8x8xf32>
    %cst_28 = arith.constant dense<0.000000e+00> : vector<8x128xf32>
    %41 = tpu.matmul %40, %21, %cst_28 {dimension_numbers = #tpu.dot_dimension_numbers<[1], [0], [0], [1], [0, 0, 1, 1], [], []>} : vector<8x8xf32>, vector<8x128xf32>, vector<8x128xf32> -> vector<8x128xf32>
    %42 = arith.addf %38, %41 : vector<8x128xf32>
    %c112_i32 = arith.constant 112 : i32
    %43 = tpu.dynamic_rotate %21 by %c112_i32 dim 1 : vector<8x128xf32>, i32 -> vector<8x128xf32>
    %c0_i32 = arith.constant 0 : i32
    %44 = vector.broadcast %c0_i32 : i32 to vector<8x128xi32>
    %45 = arith.cmpi sge, %26, %44 : vector<8x128xi32>
    %c112_i32_29 = arith.constant 112 : i32
    %46 = vector.broadcast %c112_i32_29 : i32 to vector<8x128xi32>
    %47 = arith.cmpi slt, %26, %46 : vector<8x128xi32>
    %48 = arith.andi %45, %47 : vector<8x128xi1>
    %cst_30 = arith.constant 0.000000e+00 : f32
    %49 = vector.broadcast %cst_30 : f32 to vector<8x128xf32>
    %50 = arith.select %48, %43, %49 : vector<8x128xi1>, vector<8x128xf32>
    %c2_31 = arith.constant 2 : index
    %c0_32 = arith.constant 0 : index
    %c0_33 = arith.constant 0 : index
    %51 = vector.load %arg5[%c2_31, %c0_32, %c0_33] : memref<3x8x8xf32, #tpu.memory_space<vmem>>, vector<1x8x8xf32>
    %52 = vector.shape_cast %51 : vector<1x8x8xf32> to vector<8x8xf32>
    %cst_34 = arith.constant dense<0.000000e+00> : vector<8x128xf32>
    %53 = tpu.matmul %52, %50, %cst_34 {dimension_numbers = #tpu.dot_dimension_numbers<[1], [0], [0], [1], [0, 0, 1, 1], [], []>} : vector<8x8xf32>, vector<8x128xf32>, vector<8x128xf32> -> vector<8x128xf32>
    %54 = arith.addf %42, %53 : vector<8x128xf32>
    %cst_35 = arith.constant 0.000000e+00 : f32
    %55 = vector.broadcast %cst_35 : f32 to vector<8x128xf32>
    %56 = arith.maximumf %54, %55 : vector<8x128xf32>
    %c0_36 = arith.constant 0 : index
    %c0_37 = arith.constant 0 : index
    %c0_38 = arith.constant 0 : index
    %57 = vector.load %arg7[%c0_36, %c0_37, %c0_38] : memref<1x8x128xf32, #tpu.memory_space<vmem>>, vector<1x8x128xf32>
    %58 = vector.shape_cast %57 : vector<1x8x128xf32> to vector<8x128xf32>
    %59 = vector.shape_cast %56 : vector<8x128xf32> to vector<1x8x128xf32>
    tpu.vector_store %arg7[%c0_36, %c0_37, %c0_38], %59 {strides = array<i32>} : memref<1x8x128xf32, #tpu.memory_space<vmem>>, vector<1x8x128xf32>,
    return
  }
  func.func @transform_0(%arg0: i32) -> (i32, i32, i32) {
    %c0_i32 = arith.constant 0 : i32
    %c0_i32_0 = arith.constant 0 : i32
    %c0_i32_1 = arith.constant 0 : i32
    return %arg0, %c0_i32, %c0_i32_0 : i32, i32, i32
  }
  func.func @transform_1(%arg0: i32) -> (i32, i32, i32) {
    %c0_i32 = arith.constant 0 : i32
    %c0_i32_0 = arith.constant 0 : i32
    %c0_i32_1 = arith.constant 0 : i32
    %c0_i32_2 = arith.constant 0 : i32
    return %c0_i32, %c0_i32_0, %c0_i32_1 : i32, i32, i32
  }
  func.func @transform_2(%arg0: i32) -> (i32, i32) {
    %c0_i32 = arith.constant 0 : i32
    %c0_i32_0 = arith.constant 0 : i32
    %c0_i32_1 = arith.constant 0 : i32
    return %c0_i32, %c0_i32_0 : i32, i32
  }
  func.func @transform_3(%arg0: i32) -> (i32, i32) {
    %c0_i32 = arith.constant 0 : i32
    %c0_i32_0 = arith.constant 0 : i32
    %c0_i32_1 = arith.constant 0 : i32
    return %c0_i32, %c0_i32_0 : i32, i32
  }
  func.func @transform_4(%arg0: i32) -> (i32, i32, i32) {
    %c0_i32 = arith.constant 0 : i32
    %c0_i32_0 = arith.constant 0 : i32
    %c0_i32_1 = arith.constant 0 : i32
    %c0_i32_2 = arith.constant 0 : i32
    return %c0_i32, %c0_i32_0, %c0_i32_1 : i32, i32, i32
  }
  func.func @transform_5(%arg0: i32) -> (i32, i32) {
    %c0_i32 = arith.constant 0 : i32
    %c0_i32_0 = arith.constant 0 : i32
    %c0_i32_1 = arith.constant 0 : i32
    return %c0_i32, %c0_i32_0 : i32, i32
  }
  func.func @transform_6(%arg0: i32) -> (i32, i32, i32) {
    %c0_i32 = arith.constant 0 : i32
    %c0_i32_0 = arith.constant 0 : i32
    %c0_i32_1 = arith.constant 0 : i32
    return %arg0, %c0_i32, %c0_i32_0 : i32, i32, i32
  }
}

</mosaic_0001>

<llo_original>
// kernel: tpu_custom_call.1
$region0: #{tpu_custom_call.1}
  #allocation0 [shape = 'u32[]', space=smem, size = 0x4, offset = 0x4, fixed_abs, tag = 'smem constant byte address 0x4 - core index']
  #allocation1 [shape = 'u32[144,128]{1,0:T(1,128)}', space=vmem, size = 0x12000, scoped, tag = 'internal scratch']
  %s0 = inlined_call_operand.vmem [shape: f32[2,4,128], index: 0, kind: input, shape index: {}]
  %s1 = inlined_call_operand.hbm [shape: f32[3,128,128], index: 1, kind: input, shape index: {}]
  %s2 = inlined_call_operand.vmem [shape: f32[32,4], index: 2, kind: input, shape index: {}]
  %s3 = inlined_call_operand.vmem [shape: f32[8,128], index: 3, kind: input, shape index: {}]
  %s4 = inlined_call_operand.vmem [shape: f32[3,8,8], index: 4, kind: input, shape index: {}]
  %s5 = inlined_call_operand.vmem [shape: f32[8,1], index: 5, kind: input, shape index: {}]
  %s6 = inlined_call_operand.hbm [shape: f32[2,8,128], index: 6, kind: output, shape index: {}]
  %s7 = sld [smem:[#allocation0]]
  $region61: #{tpu_custom_call.1} parent=0
    _
  %s9 = ssub.s32 1, %s7
  %s10 = scalar_select 0, %s9, %s7
  $region1: #{tpu_custom_call.1} parent=0
    #allocation2 [shape = 'u8[196608]{0}', space=vmem, size = 0x30000, scoped, tag = 'input window, operand 1, single buffered']
    #allocation3 [shape = 's32[2]{0}', space=sflag, size = 0x8, scoped, tag = 'scoped memory for tpu_custom_call.1']
    #allocation4 [shape = 's32[2]{0}', space=sflag, size = 0x8, scoped, tag = 'scoped memory for tpu_custom_call.1']
    #allocation5 [shape = 'u8[8192]{0}', space=vmem, size = 0x2000, scoped, tag = 'output window, operand 0']
    %11 = vsyncpa [#allocation3], 0
    %12 = vsyncpa [#allocation4], 0
    %s13 = scalar_lea.sflag [#allocation4], 1
    %14 = vsyncpa %s13, 0
    loop: start=0, step=1, limit=4
    $region2: #{tpu_custom_call.1} parent=1 // loop_pre_header
      _
    $region3: #{tpu_custom_call.1} parent=1 // loop_header
      %s16 = sphi 0, %s20
      %p17 = scmp.ge.s32.totalorder %s16, 4
      %s26 = sphi 0, %s28
      %s29 = sphi 0, %s26
      %s30 = sphi 0, %s29
      %s46 = sphi 0, %s30
      %s50 = sphi 0, %s50
      %s52 = sphi 0, %s50
      %s53 = sphi 0, %s52
      %s67 = sphi 0, %s53
      %s71 = sphi 0, %s71
      %s73 = sphi 0, %s71
      %s74 = sphi 0, %s73
      %s88 = sphi 0, %s74
      %s92 = sphi 0, %s92
      %s94 = sphi 0, %s92
      %s95 = sphi 0, %s94
      %s109 = sphi 0, %s95
      %s113 = sphi 0, %s113
      %s115 = sphi 0, %s113
      %s116 = sphi 0, %s115
      %s130 = sphi 0, %s116
      %s134 = sphi 0, %s134
      %s136 = sphi 0, %s134
      %s137 = sphi 0, %s136
      %s151 = sphi 0, %s137
      %s157 = sphi 0, %s159
      %s160 = sphi 0, %s157
      %s161 = sphi 0, %s160
      %s177 = sphi 0, %s161
    $region4: #{tpu_custom_call.1} parent=1 // loop_header_branch
      %19 = sbr.rel (%p17) target = $region8
    $region5: #{tpu_custom_call.1} parent=1 // loop_body
      %s21 = ssub.s32 %s16, 1
      %s22 = ssub.s32 %s16, 2
      %s23 = sadd.s32 %s16, 1
      %s24 = ssub.s32 %s16, %s23
      %p25 = scmp.eq.s32.totalorder %s24, 0
      %s27 = sadd.s32 %s26, 1
      %s28 = scalar_select %p25, %s26, %s27
      %p31 = pneg %p25
      %p32 = scmp.eq.s32.totalorder %s16, 1
      %p33 = por %p31, %p32
      %p34 = scmp.ne.s32.totalorder %s26, %s29
      %p35 = scmp.eq.s32.totalorder %s16, 0
      %p36 = por %p34, %p35
      %p37 = scmp.ne.s32.totalorder %s26, %s29
      %p38 = scmp.eq.s32.totalorder %s21, 1
      %p39 = por %p37, %p38
      %p40 = scmp.ne.s32.totalorder %s29, %s30
      %p41 = scmp.eq.s32.totalorder %s21, 0
      %p42 = por %p40, %p41
      %p43 = scmp.ne.s32.totalorder %s29, %s30
      %p44 = scmp.eq.s32.totalorder %s22, 1
      %p45 = por %p43, %p44
      %p47 = scmp.ne.s32.totalorder %s30, %s46
      %p48 = scmp.eq.s32.totalorder %s22, 0
      %p49 = por %p47, %p48
      %s51 = sadd.s32 %s50, 1
      %p54 = scmp.eq.s32.totalorder %s16, 1
      %p55 = scmp.ne.s32.totalorder %s50, %s52
      %p56 = scmp.eq.s32.totalorder %s16, 0
      %p57 = por %p55, %p56
      %p58 = scmp.ne.s32.totalorder %s50, %s52
      %p59 = scmp.eq.s32.totalorder %s21, 1
      %p60 = por %p58, %p59
      %p61 = scmp.ne.s32.totalorder %s52, %s53
      %p62 = scmp.eq.s32.totalorder %s21, 0
      %p63 = por %p61, %p62
      %p64 = scmp.ne.s32.totalorder %s52, %s53
      %p65 = scmp.eq.s32.totalorder %s22, 1
      %p66 = por %p64, %p65
      %p68 = scmp.ne.s32.totalorder %s53, %s67
      %p69 = scmp.eq.s32.totalorder %s22, 0
      %p70 = por %p68, %p69
      %s72 = sadd.s32 %s71, 1
      %p75 = scmp.eq.s32.totalorder %s16, 1
      %p76 = scmp.ne.s32.totalorder %s71, %s73
      %p77 = scmp.eq.s32.totalorder %s16, 0
      %p78 = por %p76, %p77
      %p79 = scmp.ne.s32.totalorder %s71, %s73
      %p80 = scmp.eq.s32.totalorder %s21, 1
      %p81 = por %p79, %p80
      %p82 = scmp.ne.s32.totalorder %s73, %s74
      %p83 = scmp.eq.s32.totalorder %s21, 0
      %p84 = por %p82, %p83
      %p85 = scmp.ne.s32.totalorder %s73, %s74
      %p86 = scmp.eq.s32.totalorder %s22, 1
      %p87 = por %p85, %p86
      %p89 = scmp.ne.s32.totalorder %s74, %s88
      %p90 = scmp.eq.s32.totalorder %s22, 0
      %p91 = por %p89, %p90
      %s93 = sadd.s32 %s92, 1
      %p96 = scmp.eq.s32.totalorder %s16, 1
      %p97 = scmp.ne.s32.totalorder %s92, %s94
      %p98 = scmp.eq.s32.totalorder %s16, 0
      %p99 = por %p97, %p98
      %p100 = scmp.ne.s32.totalorder %s92, %s94
      %p101 = scmp.eq.s32.totalorder %s21, 1
      %p102 = por %p100, %p101
      %p103 = scmp.ne.s32.totalorder %s94, %s95
      %p104 = scmp.eq.s32.totalorder %s21, 0
      %p105 = por %p103, %p104
      %p106 = scmp.ne.s32.totalorder %s94, %s95
      %p107 = scmp.eq.s32.totalorder %s22, 1
      %p108 = por %p106, %p107
      %p110 = scmp.ne.s32.totalorder %s95, %s109
      %p111 = scmp.eq.s32.totalorder %s22, 0
      %p112 = por %p110, %p111
      %s114 = sadd.s32 %s113, 1
      %p117 = scmp.eq.s32.totalorder %s16, 1
      %p118 = scmp.ne.s32.totalorder %s113, %s115
      %p119 = scmp.eq.s32.totalorder %s16, 0
      %p120 = por %p118, %p119
      %p121 = scmp.ne.s32.totalorder %s113, %s115
      %p122 = scmp.eq.s32.totalorder %s21, 1
      %p123 = por %p121, %p122
      %p124 = scmp.ne.s32.totalorder %s115, %s116
      %p125 = scmp.eq.s32.totalorder %s21, 0
      %p126 = por %p124, %p125
      %p127 = scmp.ne.s32.totalorder %s115, %s116
      %p128 = scmp.eq.s32.totalorder %s22, 1
      %p129 = por %p127, %p128
      %p131 = scmp.ne.s32.totalorder %s116, %s130
      %p132 = scmp.eq.s32.totalorder %s22, 0
      %p133 = por %p131, %p132
      %s135 = sadd.s32 %s134, 1
      %p138 = scmp.eq.s32.totalorder %s16, 1
      %p139 = scmp.ne.s32.totalorder %s134, %s136
      %p140 = scmp.eq.s32.totalorder %s16, 0
      %p141 = por %p139, %p140
      %p142 = scmp.ne.s32.totalorder %s134, %s136
      %p143 = scmp.eq.s32.totalorder %s21, 1
      %p144 = por %p142, %p143
      %p145 = scmp.ne.s32.totalorder %s136, %s137
      %p146 = scmp.eq.s32.totalorder %s21, 0
      %p147 = por %p145, %p146
      %p148 = scmp.ne.s32.totalorder %s136, %s137
      %p149 = scmp.eq.s32.totalorder %s22, 1
      %p150 = por %p148, %p149
      %p152 = scmp.ne.s32.totalorder %s137, %s151
      %p153 = scmp.eq.s32.totalorder %s22, 0
      %p154 = por %p152, %p153
      %s155 = ssub.s32 %s16, %s23
      %p156 = scmp.eq.s32.totalorder %s155, 0
      %s158 = sadd.s32 %s157, 1
      %s159 = scalar_select %p156, %s157, %s158
      %p162 = pneg %p156
      %p163 = scmp.eq.s32.totalorder %s16, 1
      %p164 = por %p162, %p163
      %p165 = scmp.ne.s32.totalorder %s157, %s160
      %p166 = scmp.eq.s32.totalorder %s16, 0
      %p167 = por %p165, %p166
      %p168 = scmp.ne.s32.totalorder %s157, %s160
      %p169 = scmp.eq.s32.totalorder %s21, 1
      %p170 = por %p168, %p169
      %p171 = scmp.ne.s32.totalorder %s160, %s161
      %p172 = scmp.eq.s32.totalorder %s21, 0
      %p173 = por %p171, %p172
      %p174 = scmp.ne.s32.totalorder %s160, %s161
      %p175 = scmp.eq.s32.totalorder %s22, 1
      %p176 = por %p174, %p175
      %p178 = scmp.ne.s32.totalorder %s161, %s177
      %p179 = scmp.eq.s32.totalorder %s22, 0
      %p180 = por %p178, %p179
      %p181 = scmp.le.s32.totalorder 1, %s16
      %p182 = scmp.lt.s32.totalorder %s16, 3
      %p183 = pnand %p181, %p182
      %p184 = pneg %p183
      // Predicated region
      $region9: #{tpu_custom_call.1} parent=5 // pred_check
        _
      $region10: #{tpu_custom_call.1} parent=5 // pred_check_branch
        %186 = sbr.rel (%p183) target = $region12
      $region11: #{tpu_custom_call.1} parent=5 // pred_region
        %s187 = ssub.s32 %s16, 1
        // Predicated region
        $region13: #{tpu_custom_call.1} parent=11 // pred_check
          %p188 = pneg %p63
        $region14: #{tpu_custom_call.1} parent=11 // pred_check_branch
          %190 = sbr.rel (%p188) target = $region16
        $region15: #{tpu_custom_call.1} parent=11 // pred_region
          %s192 = ssub.s32 6144, 6144
          %193 = vsyncadd [#allocation3], %s192
          %s194 = sshll.u32 [#allocation2], 4
          %s195 = int_to_ptr.vmem [resolvable:$true] %s194
          %200 = dma.hbm_to_vmem [thread:$0]  %s1, 6144, %s195, [#allocation3], 128, 128, 8
        $region16: #{tpu_custom_call.1} parent=11 // pred_fallthru
          _
        // Predicated region
        $region17: #{tpu_custom_call.1} parent=11 // pred_check
          %p201 = pneg %p84
        $region18: #{tpu_custom_call.1} parent=11 // pred_check_branch
          %203 = sbr.rel (%p201) target = $region20
        $region19: #{tpu_custom_call.1} parent=11 // pred_region
          _
        $region20: #{tpu_custom_call.1} parent=11 // pred_fallthru
          _
        // Predicated region
        $region21: #{tpu_custom_call.1} parent=11 // pred_check
          %p204 = pneg %p105
        $region22: #{tpu_custom_call.1} parent=11 // pred_check_branch
          %206 = sbr.rel (%p204) target = $region24
        $region23: #{tpu_custom_call.1} parent=11 // pred_region
          _
        $region24: #{tpu_custom_call.1} parent=11 // pred_fallthru
          _
        // Predicated region
        $region25: #{tpu_custom_call.1} parent=11 // pred_check
          %p207 = pneg %p126
        $region26: #{tpu_custom_call.1} parent=11 // pred_check_branch
          %209 = sbr.rel (%p207) target = $region28
        $region27: #{tpu_custom_call.1} parent=11 // pred_region
          _
        $region28: #{tpu_custom_call.1} parent=11 // pred_fallthru
          _
        // Predicated region
        $region29: #{tpu_custom_call.1} parent=11 // pred_check
          %p210 = pneg %p147
        $region30: #{tpu_custom_call.1} parent=11 // pred_check_branch
          %212 = sbr.rel (%p210) target = $region32
        $region31: #{tpu_custom_call.1} parent=11 // pred_region
          _
        $region32: #{tpu_custom_call.1} parent=11 // pred_fallthru
          _
      $region12: #{tpu_custom_call.1} parent=5 // pred_fallthru
        _
      %p213 = scmp.lt.s32.totalorder %s16, 2
      // Predicated region
      $region33: #{tpu_custom_call.1} parent=5 // pred_check
        %p214 = pneg %p213
      $region34: #{tpu_custom_call.1} parent=5 // pred_check_branch
        %216 = sbr.rel (%p214) target = $region36
      $region35: #{tpu_custom_call.1} parent=5 // pred_region
        // Predicated region
        $region37: #{tpu_custom_call.1} parent=35 // pred_check
          %p217 = pneg %p36
        $region38: #{tpu_custom_call.1} parent=35 // pred_check_branch
          %219 = sbr.rel (%p217) target = $region40
        $region39: #{tpu_custom_call.1} parent=35 // pred_region
          %p220 = scmp.lt.s32.totalorder %s16, 1
          %s221 = scalar_select %p220, %s16, 1
          %s222 = smul.addr %s221, 4
          %s223 = scalar_lea.vmem %s0, %s222
        $region40: #{tpu_custom_call.1} parent=35 // pred_fallthru
          _
      $region36: #{tpu_custom_call.1} parent=5 // pred_fallthru
        _
      %p224 = scmp.le.s32.totalorder 1, %s16
      %p225 = scmp.lt.s32.totalorder %s16, 3
      %p226 = pnand %p224, %p225
      %p227 = pneg %p226
      // Predicated region
      $region41: #{tpu_custom_call.1} parent=5 // pred_check
        _
      $region42: #{tpu_custom_call.1} parent=5 // pred_check_branch
        %229 = sbr.rel (%p226) target = $region44
      $region43: #{tpu_custom_call.1} parent=5 // pred_region
        %s230 = ssub.s32 %s16, 1
        // Predicated region
        $region45: #{tpu_custom_call.1} parent=43 // pred_check
          %p231 = pneg %p63
        $region46: #{tpu_custom_call.1} parent=43 // pred_check_branch
          %233 = sbr.rel (%p231) target = $region48
        $region47: #{tpu_custom_call.1} parent=43 // pred_region
          %234 = dma.done [#allocation3], 6144
        $region48: #{tpu_custom_call.1} parent=43 // pred_fallthru
          _
        %p235 = scmp.lt.s32.totalorder %s21, 1
        %s236 = scalar_select %p235, %s21, 1
        %s237 = smul.addr %s236, 4
        %s238 = scalar_lea.vmem %s0, %s237
        %p239 = pneg %p42
        %p240 = pneg %p39
        %p241 = pneg %p63
        %p242 = pneg %p60
        %p243 = pneg %p84
        %p244 = pneg %p81
        %p245 = pneg %p105
        %p246 = pneg %p102
        %p247 = pneg %p126
        %p248 = pneg %p123
        %p249 = pneg %p147
        %p250 = pneg %p144
        %p251 = pneg %p173
        %p252 = pneg %p170
        %s253 = sand.u32 %s160, 1
        %s254 = scalar_lea.sflag [#allocation4], %s253
        %s255 = sand.u32 %s160, 1
        %s256 = smul.addr %s255, 8
        %s257 = scalar_lea.vmem [#allocation5], %s256
        %p258 = scmp.lt.s32.totalorder %s21, 1
        %s259 = scalar_select %p258, %s21, 1
        %s260 = smul.addr %s259, 4
        %s261 = scalar_lea.vmem %s0, %s260
        %v262 = vld [vmem:[%s261] sm:$0xf]
        %v263 = vld [vmem:[%s2] sm:$0xff]
        %v264 = vld [vmem:[%s2 + $0x8] sm:$0xff]
        %v265 = vld [vmem:[%s2 + $0x10] sm:$0xff]
        %v266 = vld [vmem:[%s2 + $0x18] sm:$0xff]
        %vm267 = vcmask 31744
        %v269 = vsel %vm267, %v263, 0
        %v272 = vsel %vm267, %v264, 0
        %v275 = vsel %vm267, %v265, 0
        %v278 = vsel %vm267, %v266, 0
        %vm280 = vcmask 1043456
        %v282 = vsel %vm280, %v262, 0
        %284 = vmatprep.subr.mxu0 0.0
        %285 = vmatpush1.msra.mxu0 %v282
        %286 = vmatprep.subr.mxu0 0.0
        %287 = vmatpush1.msra.mxu0 0.0
        %288 = vmatprep.subr.mxu0 0.0
        %289 = vmatpush1.msra.mxu0 0.0
        %290 = vmatprep.subr.mxu0 0.0
        %291 = vmatpush1.msra.mxu0 0.0
        %292 = vmatprep.subr.mxu0 0.0
        %293 = vmatpush1.msra.mxu0 0.0
        %294 = vmatprep.subr.mxu0 0.0
        %295 = vmatpush1.msra.mxu0 0.0
        %296 = vmatprep.subr.mxu0 0.0
        %297 = vmatpush1.msra.mxu0 0.0
        %298 = vmatprep.subr.mxu0 0.0
        %299 = vmatpush1.msra.mxu0 0.0
        %300 = vmatprep.subr.mxu0 0.0
        %301 = vmatpush1.msra.mxu0 0.0
        %302 = vmatprep.subr.mxu0 0.0
        %303 = vmatpush1.msra.mxu0 0.0
        %304 = vmatprep.subr.mxu0 0.0
        %305 = vmatpush1.msra.mxu0 0.0
        %306 = vmatprep.subr.mxu0 0.0
        %307 = vmatpush1.msra.mxu0 0.0
        %308 = vmatprep.subr.mxu0 0.0
        %309 = vmatpush1.msra.mxu0 0.0
        %310 = vmatprep.subr.mxu0 0.0
        %311 = vmatpush1.msra.mxu0 0.0
        %312 = vmatprep.subr.mxu0 0.0
        %313 = vmatpush1.msra.mxu0 0.0
        %314 = vmatprep.subr.mxu0 0.0
        %315 = vmatpush1.msra.mxu0 0.0
        %316 = vmatprep.subr.mxu0 0.0
        %317 = vmatpush1.msra.mxu0 0.0
        %318 = vmatprep.subr.mxu0 0.0
        %319 = vmatpush1.msra.mxu0 0.0
        %320 = vmatprep.subr.mxu0 0.0
        %321 = vmatpush1.msra.mxu0 0.0
        %322 = vmatprep.subr.mxu0 0.0
        %323 = vmatpush1.msra.mxu0 0.0
        %324 = vmatprep.subr.mxu0 0.0
        %325 = vmatpush1.msra.mxu0 0.0
        %326 = vmatprep.subr.mxu0 0.0
        %327 = vmatpush1.msra.mxu0 0.0
        %328 = vmatprep.subr.mxu0 0.0
        %329 = vmatpush1.msra.mxu0 0.0
        %330 = vmatprep.subr.mxu0 0.0
        %331 = vmatpush1.msra.mxu0 0.0
        %332 = vmatprep.subr.mxu0 0.0
        %333 = vmatpush1.msra.mxu0 0.0
        %334 = vmatprep.subr.mxu0 0.0
        %335 = vmatpush1.msra.mxu0 0.0
        %336 = vmatprep.subr.mxu0 0.0
        %337 = vmatpush1.msra.mxu0 0.0
        %338 = vmatprep.subr.mxu0 0.0
        %339 = vmatpush1.msra.mxu0 0.0
        %340 = vmatprep.subr.mxu0 0.0
        %341 = vmatpush1.msra.mxu0 0.0
        %342 = vmatprep.subr.mxu0 0.0
        %343 = vmatpush1.msra.mxu0 0.0
        %344 = vmatprep.subr.mxu0 0.0
        %345 = vmatpush1.msra.mxu0 0.0
        %346 = vmatprep.subr.mxu0 0.0
        %347 = vmatpush1.msra.mxu0 0.0
        %348 = vmatprep.mubr.f32.mxu0 0.0
        %349 = vmatmul.mubr.f32.gmra.mrb[0].mxu0 %v269
        %v350 = vpop.f32.mrb[0].mxu0
        %v351 = vadd.f32 0.0, %v350
        %v352 = vpop.f32.mrb[0].mxu0
        %353 = vmatprep.mubr.f32.mxu0 0.0
        %354 = vmatmul.mubr.f32.gmra.mrb[0].mxu0 %v272
        %v355 = vpop.f32.mrb[0].mxu0
        %v356 = vadd.f32 0.0, %v355
        %v357 = vpop.f32.mrb[0].mxu0
        %358 = vmatprep.mubr.f32.mxu0 0.0
        %359 = vmatmul.mubr.f32.gmra.mrb[0].mxu0 %v275
        %v360 = vpop.f32.mrb[0].mxu0
        %v361 = vadd.f32 0.0, %v360
        %v362 = vpop.f32.mrb[0].mxu0
        %363 = vmatprep.mubr.f32.mxu0 0.0
        %364 = vmatmul.mubr.f32.gmra.mrb[0].mxu0 %v278
        %v365 = vpop.f32.mrb[0].mxu0
        %v366 = vadd.f32 0.0, %v365
        %v367 = vpop.f32.mrb[0].mxu0
        %368 = vdwg.mxu0
        %v369 = vld [vmem:[%s3] sm:$0xff]
        %v370 = vld [vmem:[#allocation2] sm:$0xff]
        %v371 = vld [vmem:[#allocation2 + $0x8] sm:$0xff]
        %v372 = vld [vmem:[#allocation2 + $0x10] sm:$0xff]
        %v373 = vld [vmem:[#allocation2 + $0x18] sm:$0xff]
        %v374 = vld [vmem:[#allocation2 + $0x20] sm:$0xff]
        %v375 = vld [vmem:[#allocation2 + $0x28] sm:$0xff]
        %v376 = vld [vmem:[#allocation2 + $0x30] sm:$0xff]
        %v377 = vld [vmem:[#allocation2 + $0x38] sm:$0xff]
        %v378 = vld [vmem:[#allocation2 + $0x40] sm:$0xff]
        %v379 = vld [vmem:[#allocation2 + $0x48] sm:$0xff]
        %v380 = vld [vmem:[#allocation2 + $0x50] sm:$0xff]
        %v381 = vld [vmem:[#allocation2 + $0x58] sm:$0xff]
        %v382 = vld [vmem:[#allocation2 + $0x60] sm:$0xff]
        %v383 = vld [vmem:[#allocation2 + $0x68] sm:$0xff]
        %v384 = vld [vmem:[#allocation2 + $0x70] sm:$0xff]
        %v385 = vld [vmem:[#allocation2 + $0x78] sm:$0xff]
        %386 = vmatprep.subr.mxu0 0.0
        %387 = vmatpush1.msra.mxu0 %v370
        %388 = vmatprep.subr.mxu0 0.0
        %389 = vmatpush1.msra.mxu0 %v371
        %390 = vmatprep.subr.mxu0 0.0
        %391 = vmatpush1.msra.mxu0 %v372
        %392 = vmatprep.subr.mxu0 0.0
        %393 = vmatpush1.msra.mxu0 %v373
        %394 = vmatprep.subr.mxu0 0.0
        %395 = vmatpush1.msra.mxu0 %v374
        %396 = vmatprep.subr.mxu0 0.0
        %397 = vmatpush1.msra.mxu0 %v375
        %398 = vmatprep.subr.mxu0 0.0
        %399 = vmatpush1.msra.mxu0 %v376
        %400 = vmatprep.subr.mxu0 0.0
        %401 = vmatpush1.msra.mxu0 %v377
        %402 = vmatprep.subr.mxu0 0.0
        %403 = vmatpush1.msra.mxu0 %v378
        %404 = vmatprep.subr.mxu0 0.0
        %405 = vmatpush1.msra.mxu0 %v379
        %406 = vmatprep.subr.mxu0 0.0
        %407 = vmatpush1.msra.mxu0 %v380
        %408 = vmatprep.subr.mxu0 0.0
        %409 = vmatpush1.msra.mxu0 %v381
        %410 = vmatprep.subr.mxu0 0.0
        %411 = vmatpush1.msra.mxu0 %v382
        %412 = vmatprep.subr.mxu0 0.0
        %413 = vmatpush1.msra.mxu0 %v383
        %414 = vmatprep.subr.mxu0 0.0
        %415 = vmatpush1.msra.mxu0 %v384
        %416 = vmatprep.subr.mxu0 0.0
        %417 = vmatpush1.msra.mxu0 %v385
        %418 = vmatprep.subr.mxu0 0.0
        %419 = vmatpush1.msra.mxu0 0.0
        %420 = vmatprep.subr.mxu0 0.0
        %421 = vmatpush1.msra.mxu0 0.0
        %422 = vmatprep.subr.mxu0 0.0
        %423 = vmatpush1.msra.mxu0 0.0
        %424 = vmatprep.subr.mxu0 0.0
        %425 = vmatpush1.msra.mxu0 0.0
        %426 = vmatprep.subr.mxu0 0.0
        %427 = vmatpush1.msra.mxu0 0.0
        %428 = vmatprep.subr.mxu0 0.0
        %429 = vmatpush1.msra.mxu0 0.0
        %430 = vmatprep.subr.mxu0 0.0
        %431 = vmatpush1.msra.mxu0 0.0
        %432 = vmatprep.subr.mxu0 0.0
        %433 = vmatpush1.msra.mxu0 0.0
        %434 = vmatprep.subr.mxu0 0.0
        %435 = vmatpush1.msra.mxu0 0.0
        %436 = vmatprep.subr.mxu0 0.0
        %437 = vmatpush1.msra.mxu0 0.0
        %438 = vmatprep.subr.mxu0 0.0
        %439 = vmatpush1.msra.mxu0 0.0
        %440 = vmatprep.subr.mxu0 0.0
        %441 = vmatpush1.msra.mxu0 0.0
        %442 = vmatprep.subr.mxu0 0.0
        %443 = vmatpush1.msra.mxu0 0.0
        %444 = vmatprep.subr.mxu0 0.0
        %445 = vmatpush1.msra.mxu0 0.0
        %446 = vmatprep.subr.mxu0 0.0
        %447 = vmatpush1.msra.mxu0 0.0
        %448 = vmatprep.subr.mxu0 0.0
        %449 = vmatpush1.msra.mxu0 0.0
        %450 = vmatprep.mubr.f32.mxu0 0.0
        %451 = vmatmul.mubr.f32.gmra.mrb[0].mxu0 %v351
        %v452 = vpop.f32.mrb[0].mxu0
        %v453 = vadd.f32 0.0, %v452
        %v454 = vpop.f32.mrb[0].mxu0
        %455 = vdwg.mxu0
        %v456 = vadd.f32 %v369, %v453
        %s457 = scalar_lea.vmem [#allocation2], 128
        %v458 = vld [vmem:[%s457] sm:$0xff]
        %v459 = vld [vmem:[%s457 + $0x8] sm:$0xff]
        %v460 = vld [vmem:[%s457 + $0x10] sm:$0xff]
        %v461 = vld [vmem:[%s457 + $0x18] sm:$0xff]
        %v462 = vld [vmem:[%s457 + $0x20] sm:$0xff]
        %v463 = vld [vmem:[%s457 + $0x28] sm:$0xff]
        %v464 = vld [vmem:[%s457 + $0x30] sm:$0xff]
        %v465 = vld [vmem:[%s457 + $0x38] sm:$0xff]
        %v466 = vld [vmem:[%s457 + $0x40] sm:$0xff]
        %v467 = vld [vmem:[%s457 + $0x48] sm:$0xff]
        %v468 = vld [vmem:[%s457 + $0x50] sm:$0xff]
        %v469 = vld [vmem:[%s457 + $0x58] sm:$0xff]
        %v470 = vld [vmem:[%s457 + $0x60] sm:$0xff]
        %v471 = vld [vmem:[%s457 + $0x68] sm:$0xff]
        %v472 = vld [vmem:[%s457 + $0x70] sm:$0xff]
        %v473 = vld [vmem:[%s457 + $0x78] sm:$0xff]
        %474 = vmatprep.subr.mxu0 0.0
        %475 = vmatpush1.msra.mxu0 %v458
        %476 = vmatprep.subr.mxu0 0.0
        %477 = vmatpush1.msra.mxu0 %v459
        %478 = vmatprep.subr.mxu0 0.0
        %479 = vmatpush1.msra.mxu0 %v460
        %480 = vmatprep.subr.mxu0 0.0
        %481 = vmatpush1.msra.mxu0 %v461
        %482 = vmatprep.subr.mxu0 0.0
        %483 = vmatpush1.msra.mxu0 %v462
        %484 = vmatprep.subr.mxu0 0.0
        %485 = vmatpush1.msra.mxu0 %v463
        %486 = vmatprep.subr.mxu0 0.0
        %487 = vmatpush1.msra.mxu0 %v464
        %488 = vmatprep.subr.mxu0 0.0
        %489 = vmatpush1.msra.mxu0 %v465
        %490 = vmatprep.subr.mxu0 0.0
        %491 = vmatpush1.msra.mxu0 %v466
        %492 = vmatprep.subr.mxu0 0.0
        %493 = vmatpush1.msra.mxu0 %v467
        %494 = vmatprep.subr.mxu0 0.0
        %495 = vmatpush1.msra.mxu0 %v468
        %496 = vmatprep.subr.mxu0 0.0
        %497 = vmatpush1.msra.mxu0 %v469
        %498 = vmatprep.subr.mxu0 0.0
        %499 = vmatpush1.msra.mxu0 %v470
        %500 = vmatprep.subr.mxu0 0.0
        %501 = vmatpush1.msra.mxu0 %v471
        %502 = vmatprep.subr.mxu0 0.0
        %503 = vmatpush1.msra.mxu0 %v472
        %504 = vmatprep.subr.mxu0 0.0
        %505 = vmatpush1.msra.mxu0 %v473
        %506 = vmatprep.subr.mxu0 0.0
        %507 = vmatpush1.msra.mxu0 0.0
        %508 = vmatprep.subr.mxu0 0.0
        %509 = vmatpush1.msra.mxu0 0.0
        %510 = vmatprep.subr.mxu0 0.0
        %511 = vmatpush1.msra.mxu0 0.0
        %512 = vmatprep.subr.mxu0 0.0
        %513 = vmatpush1.msra.mxu0 0.0
        %514 = vmatprep.subr.mxu0 0.0
        %515 = vmatpush1.msra.mxu0 0.0
        %516 = vmatprep.subr.mxu0 0.0
        %517 = vmatpush1.msra.mxu0 0.0
        %518 = vmatprep.subr.mxu0 0.0
        %519 = vmatpush1.msra.mxu0 0.0
        %520 = vmatprep.subr.mxu0 0.0
        %521 = vmatpush1.msra.mxu0 0.0
        %522 = vmatprep.subr.mxu0 0.0
        %523 = vmatpush1.msra.mxu0 0.0
        %524 = vmatprep.subr.mxu0 0.0
        %525 = vmatpush1.msra.mxu0 0.0
        %526 = vmatprep.subr.mxu0 0.0
        %527 = vmatpush1.msra.mxu0 0.0
        %528 = vmatprep.subr.mxu0 0.0
        %529 = vmatpush1.msra.mxu0 0.0
        %530 = vmatprep.subr.mxu0 0.0
        %531 = vmatpush1.msra.mxu0 0.0
        %532 = vmatprep.subr.mxu0 0.0
        %533 = vmatpush1.msra.mxu0 0.0
        %534 = vmatprep.subr.mxu0 0.0
        %535 = vmatpush1.msra.mxu0 0.0
        %536 = vmatprep.subr.mxu0 0.0
        %537 = vmatpush1.msra.mxu0 0.0
        %538 = vmatprep.mubr.f32.mxu0 0.0
        %539 = vmatmul.mubr.f32.gmra.mrb[0].mxu0 %v356
        %v540 = vpop.f32.mrb[0].mxu0
        %v541 = vadd.f32 0.0, %v540
        %v542 = vpop.f32.mrb[0].mxu0
        %543 = vdwg.mxu0
        %v544 = vadd.f32 %v456, %v541
        %s545 = scalar_lea.vmem [#allocation2], 256
        %v546 = vld [vmem:[%s545] sm:$0xff]
        %v547 = vld [vmem:[%s545 + $0x8] sm:$0xff]
        %v548 = vld [vmem:[%s545 + $0x10] sm:$0xff]
        %v549 = vld [vmem:[%s545 + $0x18] sm:$0xff]
        %v550 = vld [vmem:[%s545 + $0x20] sm:$0xff]
        %v551 = vld [vmem:[%s545 + $0x28] sm:$0xff]
        %v552 = vld [vmem:[%s545 + $0x30] sm:$0xff]
        %v553 = vld [vmem:[%s545 + $0x38] sm:$0xff]
        %v554 = vld [vmem:[%s545 + $0x40] sm:$0xff]
        %v555 = vld [vmem:[%s545 + $0x48] sm:$0xff]
        %v556 = vld [vmem:[%s545 + $0x50] sm:$0xff]
        %v557 = vld [vmem:[%s545 + $0x58] sm:$0xff]
        %v558 = vld [vmem:[%s545 + $0x60] sm:$0xff]
        %v559 = vld [vmem:[%s545 + $0x68] sm:$0xff]
        %v560 = vld [vmem:[%s545 + $0x70] sm:$0xff]
        %v561 = vld [vmem:[%s545 + $0x78] sm:$0xff]
        %562 = vmatprep.subr.mxu0 0.0
        %563 = vmatpush1.msra.mxu0 %v546
        %564 = vmatprep.subr.mxu0 0.0
        %565 = vmatpush1.msra.mxu0 %v547
        %566 = vmatprep.subr.mxu0 0.0
        %567 = vmatpush1.msra.mxu0 %v548
        %568 = vmatprep.subr.mxu0 0.0
        %569 = vmatpush1.msra.mxu0 %v549
        %570 = vmatprep.subr.mxu0 0.0
        %571 = vmatpush1.msra.mxu0 %v550
        %572 = vmatprep.subr.mxu0 0.0
        %573 = vmatpush1.msra.mxu0 %v551
        %574 = vmatprep.subr.mxu0 0.0
        %575 = vmatpush1.msra.mxu0 %v552
        %576 = vmatprep.subr.mxu0 0.0
        %577 = vmatpush1.msra.mxu0 %v553
        %578 = vmatprep.subr.mxu0 0.0
        %579 = vmatpush1.msra.mxu0 %v554
        %580 = vmatprep.subr.mxu0 0.0
        %581 = vmatpush1.msra.mxu0 %v555
        %582 = vmatprep.subr.mxu0 0.0
        %583 = vmatpush1.msra.mxu0 %v556
        %584 = vmatprep.subr.mxu0 0.0
        %585 = vmatpush1.msra.mxu0 %v557
        %586 = vmatprep.subr.mxu0 0.0
        %587 = vmatpush1.msra.mxu0 %v558
        %588 = vmatprep.subr.mxu0 0.0
        %589 = vmatpush1.msra.mxu0 %v559
        %590 = vmatprep.subr.mxu0 0.0
        %591 = vmatpush1.msra.mxu0 %v560
        %592 = vmatprep.subr.mxu0 0.0
        %593 = vmatpush1.msra.mxu0 %v561
        %594 = vmatprep.subr.mxu0 0.0
        %595 = vmatpush1.msra.mxu0 0.0
        %596 = vmatprep.subr.mxu0 0.0
        %597 = vmatpush1.msra.mxu0 0.0
        %598 = vmatprep.subr.mxu0 0.0
        %599 = vmatpush1.msra.mxu0 0.0
        %600 = vmatprep.subr.mxu0 0.0
        %601 = vmatpush1.msra.mxu0 0.0
        %602 = vmatprep.subr.mxu0 0.0
        %603 = vmatpush1.msra.mxu0 0.0
        %604 = vmatprep.subr.mxu0 0.0
        %605 = vmatpush1.msra.mxu0 0.0
        %606 = vmatprep.subr.mxu0 0.0
        %607 = vmatpush1.msra.mxu0 0.0
        %608 = vmatprep.subr.mxu0 0.0
        %609 = vmatpush1.msra.mxu0 0.0
        %610 = vmatprep.subr.mxu0 0.0
        %611 = vmatpush1.msra.mxu0 0.0
        %612 = vmatprep.subr.mxu0 0.0
        %613 = vmatpush1.msra.mxu0 0.0
        %614 = vmatprep.subr.mxu0 0.0
        %615 = vmatpush1.msra.mxu0 0.0
        %616 = vmatprep.subr.mxu0 0.0
        %617 = vmatpush1.msra.mxu0 0.0
        %618 = vmatprep.subr.mxu0 0.0
        %619 = vmatpush1.msra.mxu0 0.0
        %620 = vmatprep.subr.mxu0 0.0
        %621 = vmatpush1.msra.mxu0 0.0
        %622 = vmatprep.subr.mxu0 0.0
        %623 = vmatpush1.msra.mxu0 0.0
        %624 = vmatprep.subr.mxu0 0.0
        %625 = vmatpush1.msra.mxu0 0.0
        %626 = vmatprep.mubr.f32.mxu0 0.0
        %627 = vmatmul.mubr.f32.gmra.mrb[0].mxu0 %v361
        %v628 = vpop.f32.mrb[0].mxu0
        %v629 = vadd.f32 0.0, %v628
        %v630 = vpop.f32.mrb[0].mxu0
        %631 = vdwg.mxu0
        %v632 = vadd.f32 %v544, %v629
        %v633 = vmax.f32 %v632, 0.0
        %v634 = vld [vmem:[%s5] sm:$0xff]
        %636 = vset.pattern.permute.xlu0 0
        %637 = vperm.xlu0 %636, %v634
        %v638 = vpop.permute.xlu0 %637
        %v640 = vadd.f32 %v366, %v638
        %v641 = vlaneseq
        %v642 = vand.u32 %v641, 127
        %643 = vrot.lane.b32.xlu0 %v633, 16
        %v644 = vpop.permute.xlu0 %643
        %vm645 = vcmp.ge.s32.totalorder %v642, 16
        %vm646 = vcmp.lt.s32.totalorder %v642, 128
        %vm647 = vmand %vm645, %vm646
        %v648 = vsel %vm647, %v644, 0.0
        %v649 = vld [vmem:[%s4] sm:$0xff]
        %vm650 = vcmask 64512
        %v652 = vsel %vm650, %v649, 0
        %654 = vmatprep.subr.mxu0 0.0
        %655 = vmatpush1.msra.mxu0 %v648
        %656 = vmatprep.subr.mxu0 0.0
        %657 = vmatpush1.msra.mxu0 0.0
        %658 = vmatprep.subr.mxu0 0.0
        %659 = vmatpush1.msra.mxu0 0.0
        %660 = vmatprep.subr.mxu0 0.0
        %661 = vmatpush1.msra.mxu0 0.0
        %662 = vmatprep.subr.mxu0 0.0
        %663 = vmatpush1.msra.mxu0 0.0
        %664 = vmatprep.subr.mxu0 0.0
        %665 = vmatpush1.msra.mxu0 0.0
        %666 = vmatprep.subr.mxu0 0.0
        %667 = vmatpush1.msra.mxu0 0.0
        %668 = vmatprep.subr.mxu0 0.0
        %669 = vmatpush1.msra.mxu0 0.0
        %670 = vmatprep.subr.mxu0 0.0
        %671 = vmatpush1.msra.mxu0 0.0
        %672 = vmatprep.subr.mxu0 0.0
        %673 = vmatpush1.msra.mxu0 0.0
        %674 = vmatprep.subr.mxu0 0.0
        %675 = vmatpush1.msra.mxu0 0.0
        %676 = vmatprep.subr.mxu0 0.0
        %677 = vmatpush1.msra.mxu0 0.0
        %678 = vmatprep.subr.mxu0 0.0
        %679 = vmatpush1.msra.mxu0 0.0
        %680 = vmatprep.subr.mxu0 0.0
        %681 = vmatpush1.msra.mxu0 0.0
        %682 = vmatprep.subr.mxu0 0.0
        %683 = vmatpush1.msra.mxu0 0.0
        %684 = vmatprep.subr.mxu0 0.0
        %685 = vmatpush1.msra.mxu0 0.0
        %686 = vmatprep.subr.mxu0 0.0
        %687 = vmatpush1.msra.mxu0 0.0
        %688 = vmatprep.subr.mxu0 0.0
        %689 = vmatpush1.msra.mxu0 0.0
        %690 = vmatprep.subr.mxu0 0.0
        %691 = vmatpush1.msra.mxu0 0.0
        %692 = vmatprep.subr.mxu0 0.0
        %693 = vmatpush1.msra.mxu0 0.0
        %694 = vmatprep.subr.mxu0 0.0
        %695 = vmatpush1.msra.mxu0 0.0
        %696 = vmatprep.subr.mxu0 0.0
        %697 = vmatpush1.msra.mxu0 0.0
        %698 = vmatprep.subr.mxu0 0.0
        %699 = vmatpush1.msra.mxu0 0.0
        %700 = vmatprep.subr.mxu0 0.0
        %701 = vmatpush1.msra.mxu0 0.0
        %702 = vmatprep.subr.mxu0 0.0
        %703 = vmatpush1.msra.mxu0 0.0
        %704 = vmatprep.subr.mxu0 0.0
        %705 = vmatpush1.msra.mxu0 0.0
        %706 = vmatprep.subr.mxu0 0.0
        %707 = vmatpush1.msra.mxu0 0.0
        %708 = vmatprep.subr.mxu0 0.0
        %709 = vmatpush1.msra.mxu0 0.0
        %710 = vmatprep.subr.mxu0 0.0
        %711 = vmatpush1.msra.mxu0 0.0
        %712 = vmatprep.subr.mxu0 0.0
        %713 = vmatpush1.msra.mxu0 0.0
        %714 = vmatprep.subr.mxu0 0.0
        %715 = vmatpush1.msra.mxu0 0.0
        %716 = vmatprep.subr.mxu0 0.0
        %717 = vmatpush1.msra.mxu0 0.0
        %718 = vmatprep.mubr.f32.mxu0 0.0
        %719 = vmatmul.mubr.f32.gmra.mrb[0].mxu0 %v652
        %v720 = vpop.f32.mrb[0].mxu0
        %v721 = vadd.f32 0.0, %v720
        %v722 = vpop.f32.mrb[0].mxu0
        %723 = vdwg.mxu0
        %v724 = vadd.f32 %v640, %v721
        %s725 = scalar_lea.vmem %s4, 8
        %v726 = vld [vmem:[%s725] sm:$0xff]
        %v728 = vsel %vm650, %v726, 0
        %730 = vmatprep.subr.mxu0 0.0
        %731 = vmatpush1.msra.mxu0 %v633
        %732 = vmatprep.subr.mxu0 0.0
        %733 = vmatpush1.msra.mxu0 0.0
        %734 = vmatprep.subr.mxu0 0.0
        %735 = vmatpush1.msra.mxu0 0.0
        %736 = vmatprep.subr.mxu0 0.0
        %737 = vmatpush1.msra.mxu0 0.0
        %738 = vmatprep.subr.mxu0 0.0
        %739 = vmatpush1.msra.mxu0 0.0
        %740 = vmatprep.subr.mxu0 0.0
        %741 = vmatpush1.msra.mxu0 0.0
        %742 = vmatprep.subr.mxu0 0.0
        %743 = vmatpush1.msra.mxu0 0.0
        %744 = vmatprep.subr.mxu0 0.0
        %745 = vmatpush1.msra.mxu0 0.0
        %746 = vmatprep.subr.mxu0 0.0
        %747 = vmatpush1.msra.mxu0 0.0
        %748 = vmatprep.subr.mxu0 0.0
        %749 = vmatpush1.msra.mxu0 0.0
        %750 = vmatprep.subr.mxu0 0.0
        %751 = vmatpush1.msra.mxu0 0.0
        %752 = vmatprep.subr.mxu0 0.0
        %753 = vmatpush1.msra.mxu0 0.0
        %754 = vmatprep.subr.mxu0 0.0
        %755 = vmatpush1.msra.mxu0 0.0
        %756 = vmatprep.subr.mxu0 0.0
        %757 = vmatpush1.msra.mxu0 0.0
        %758 = vmatprep.subr.mxu0 0.0
        %759 = vmatpush1.msra.mxu0 0.0
        %760 = vmatprep.subr.mxu0 0.0
        %761 = vmatpush1.msra.mxu0 0.0
        %762 = vmatprep.subr.mxu0 0.0
        %763 = vmatpush1.msra.mxu0 0.0
        %764 = vmatprep.subr.mxu0 0.0
        %765 = vmatpush1.msra.mxu0 0.0
        %766 = vmatprep.subr.mxu0 0.0
        %767 = vmatpush1.msra.mxu0 0.0
        %768 = vmatprep.subr.mxu0 0.0
        %769 = vmatpush1.msra.mxu0 0.0
        %770 = vmatprep.subr.mxu0 0.0
        %771 = vmatpush1.msra.mxu0 0.0
        %772 = vmatprep.subr.mxu0 0.0
        %773 = vmatpush1.msra.mxu0 0.0
        %774 = vmatprep.subr.mxu0 0.0
        %775 = vmatpush1.msra.mxu0 0.0
        %776 = vmatprep.subr.mxu0 0.0
        %777 = vmatpush1.msra.mxu0 0.0
        %778 = vmatprep.subr.mxu0 0.0
        %779 = vmatpush1.msra.mxu0 0.0
        %780 = vmatprep.subr.mxu0 0.0
        %781 = vmatpush1.msra.mxu0 0.0
        %782 = vmatprep.subr.mxu0 0.0
        %783 = vmatpush1.msra.mxu0 0.0
        %784 = vmatprep.subr.mxu0 0.0
        %785 = vmatpush1.msra.mxu0 0.0
        %786 = vmatprep.subr.mxu0 0.0
        %787 = vmatpush1.msra.mxu0 0.0
        %788 = vmatprep.subr.mxu0 0.0
        %789 = vmatpush1.msra.mxu0 0.0
        %790 = vmatprep.subr.mxu0 0.0
        %791 = vmatpush1.msra.mxu0 0.0
        %792 = vmatprep.subr.mxu0 0.0
        %793 = vmatpush1.msra.mxu0 0.0
        %794 = vmatprep.mubr.f32.mxu0 0.0
        %795 = vmatmul.mubr.f32.gmra.mrb[0].mxu0 %v728
        %v796 = vpop.f32.mrb[0].mxu0
        %v797 = vadd.f32 0.0, %v796
        %v798 = vpop.f32.mrb[0].mxu0
        %799 = vdwg.mxu0
        %v800 = vadd.f32 %v724, %v797
        %801 = vrot.lane.b32.xlu0 %v633, 112
        %v802 = vpop.permute.xlu0 %801
        %vm803 = vcmp.ge.s32.totalorder %v642, 0
        %vm804 = vcmp.lt.s32.totalorder %v642, 112
        %vm805 = vmand %vm803, %vm804
        %v806 = vsel %vm805, %v802, 0.0
        %s807 = scalar_lea.vmem %s4, 16
        %v808 = vld [vmem:[%s807] sm:$0xff]
        %v810 = vsel %vm650, %v808, 0
        %812 = vmatprep.subr.mxu0 0.0
        %813 = vmatpush1.msra.mxu0 %v806
        %814 = vmatprep.subr.mxu0 0.0
        %815 = vmatpush1.msra.mxu0 0.0
        %816 = vmatprep.subr.mxu0 0.0
        %817 = vmatpush1.msra.mxu0 0.0
        %818 = vmatprep.subr.mxu0 0.0
        %819 = vmatpush1.msra.mxu0 0.0
        %820 = vmatprep.subr.mxu0 0.0
        %821 = vmatpush1.msra.mxu0 0.0
        %822 = vmatprep.subr.mxu0 0.0
        %823 = vmatpush1.msra.mxu0 0.0
        %824 = vmatprep.subr.mxu0 0.0
        %825 = vmatpush1.msra.mxu0 0.0
        %826 = vmatprep.subr.mxu0 0.0
        %827 = vmatpush1.msra.mxu0 0.0
        %828 = vmatprep.subr.mxu0 0.0
        %829 = vmatpush1.msra.mxu0 0.0
        %830 = vmatprep.subr.mxu0 0.0
        %831 = vmatpush1.msra.mxu0 0.0
        %832 = vmatprep.subr.mxu0 0.0
        %833 = vmatpush1.msra.mxu0 0.0
        %834 = vmatprep.subr.mxu0 0.0
        %835 = vmatpush1.msra.mxu0 0.0
        %836 = vmatprep.subr.mxu0 0.0
        %837 = vmatpush1.msra.mxu0 0.0
        %838 = vmatprep.subr.mxu0 0.0
        %839 = vmatpush1.msra.mxu0 0.0
        %840 = vmatprep.subr.mxu0 0.0
        %841 = vmatpush1.msra.mxu0 0.0
        %842 = vmatprep.subr.mxu0 0.0
        %843 = vmatpush1.msra.mxu0 0.0
        %844 = vmatprep.subr.mxu0 0.0
        %845 = vmatpush1.msra.mxu0 0.0
        %846 = vmatprep.subr.mxu0 0.0
        %847 = vmatpush1.msra.mxu0 0.0
        %848 = vmatprep.subr.mxu0 0.0
        %849 = vmatpush1.msra.mxu0 0.0
        %850 = vmatprep.subr.mxu0 0.0
        %851 = vmatpush1.msra.mxu0 0.0
        %852 = vmatprep.subr.mxu0 0.0
        %853 = vmatpush1.msra.mxu0 0.0
        %854 = vmatprep.subr.mxu0 0.0
        %855 = vmatpush1.msra.mxu0 0.0
        %856 = vmatprep.subr.mxu0 0.0
        %857 = vmatpush1.msra.mxu0 0.0
        %858 = vmatprep.subr.mxu0 0.0
        %859 = vmatpush1.msra.mxu0 0.0
        %860 = vmatprep.subr.mxu0 0.0
        %861 = vmatpush1.msra.mxu0 0.0
        %862 = vmatprep.subr.mxu0 0.0
        %863 = vmatpush1.msra.mxu0 0.0
        %864 = vmatprep.subr.mxu0 0.0
        %865 = vmatpush1.msra.mxu0 0.0
        %866 = vmatprep.subr.mxu0 0.0
        %867 = vmatpush1.msra.mxu0 0.0
        %868 = vmatprep.subr.mxu0 0.0
        %869 = vmatpush1.msra.mxu0 0.0
        %870 = vmatprep.subr.mxu0 0.0
        %871 = vmatpush1.msra.mxu0 0.0
        %872 = vmatprep.subr.mxu0 0.0
        %873 = vmatpush1.msra.mxu0 0.0
        %874 = vmatprep.subr.mxu0 0.0
        %875 = vmatpush1.msra.mxu0 0.0
        %876 = vmatprep.mubr.f32.mxu0 0.0
        %877 = vmatmul.mubr.f32.gmra.mrb[0].mxu0 %v810
        %v878 = vpop.f32.mrb[0].mxu0
        %v879 = vadd.f32 0.0, %v878
        %v880 = vpop.f32.mrb[0].mxu0
        %881 = vdwg.mxu0
        %v882 = vadd.f32 %v800, %v879
        %v883 = vmax.f32 %v882, 0.0
        %884 = vst [vmem:[%s257] sm:$0xff] %v883
        %s885 = sand.u32 %s160, 1
        %s886 = scalar_lea.sflag [#allocation4], %s885
        %s887 = sand.u32 %s160, 1
        %s888 = smul.addr %s887, 8
        %s889 = scalar_lea.vmem [#allocation5], %s888
        // Predicated region
        $region49: #{tpu_custom_call.1} parent=43 // pred_check
          %p890 = pneg %p170
        $region50: #{tpu_custom_call.1} parent=43 // pred_check_branch
          %892 = sbr.rel (%p890) target = $region52
        $region51: #{tpu_custom_call.1} parent=43 // pred_region
          %s894 = ssub.s32 128, 128
          %895 = vsyncadd %s886, %s894
          %s896 = smul.addr %s21, 128
          %s897 = scalar_lea.hbm %s6, %s896
          %s899 = sshll.u32 %s889, 4
          %s900 = int_to_ptr.vmem [resolvable:$true] %s899
          %902 = dma.vmem_to_hbm [thread:$0]  %s900, 128, %s897, %s886
        $region52: #{tpu_custom_call.1} parent=43 // pred_fallthru
          _
      $region44: #{tpu_custom_call.1} parent=5 // pred_fallthru
        _
      %p903 = scmp.le.s32.totalorder 2, %s16
      // Predicated region
      $region53: #{tpu_custom_call.1} parent=5 // pred_check
        %p904 = pneg %p903
      $region54: #{tpu_custom_call.1} parent=5 // pred_check_branch
        %906 = sbr.rel (%p904) target = $region56
      $region55: #{tpu_custom_call.1} parent=5 // pred_region
        %s907 = ssub.s32 %s16, 2
        // Predicated region
        $region57: #{tpu_custom_call.1} parent=55 // pred_check
          %p908 = pneg %p176
        $region58: #{tpu_custom_call.1} parent=55 // pred_check_branch
          %910 = sbr.rel (%p908) target = $region60
        $region59: #{tpu_custom_call.1} parent=55 // pred_region
          %s911 = sand.u32 %s161, 1
          %s912 = scalar_lea.sflag [#allocation4], %s911
          %s913 = sand.u32 %s161, 1
          %s914 = smul.addr %s913, 8
          %s915 = scalar_lea.vmem [#allocation5], %s914
          %916 = dma.done %s912, 128
        $region60: #{tpu_custom_call.1} parent=55 // pred_fallthru
          _
      $region56: #{tpu_custom_call.1} parent=5 // pred_fallthru
        _
    $region6: #{tpu_custom_call.1} parent=1 // loop_footer
      %s20 = sadd.s32 1, %s16
    $region7: #{tpu_custom_call.1} parent=1 // loop_footer_branch
      %15 = sbr.rel target = $region3
    $region8: #{tpu_custom_call.1} parent=1 // loop_exit
      _
    %917 = vsyncpa [#allocation3], 1
    %s918 = scalar_lea.sflag [#allocation3], 1
    %919 = vsyncpa %s918, 1
    %920 = vsyncpa [#allocation4], 1
    %s921 = scalar_lea.sflag [#allocation4], 1
    %922 = vsyncpa %s921, 1

</llo_original>
